<compile_context>
chip_gen: v7x
topology: tpu7x:2x2x1
jax: 0.10.0
libtpu: 0.0.40
codegen_flags: <defaults>
</compile_context>

<pallas_src>
import functools
import math
import numpy as np
import jax
import jax.numpy as jnp
from jax.experimental import pallas as pl
from jax.experimental.pallas import tpu as pltpu


def _round_up(a, b):
    return ((a + b - 1) // b) * b


# ---------------------------------------------------------------------------
# Kernel 1: duration MLP  ->  softplus(relu(x @ W1 + b1) @ w2 + b2)
# Tokens live on the lane axis of the output (lane-dense (1, TM) stores);
# the first Linear contracts on D directly from the natural (TM, D) block
# (no host transpose); the second Linear (out_features=1) is a VPU multiply
# + sublane reduction instead of an N=1 MXU matmul.
# ---------------------------------------------------------------------------
def _duration_mlp_kernel(x_ref, w1_ref, b1_ref, w2_ref, b2_ref, out_ref):
    # x_ref: (TM, D); w1_ref: (H, D); b1/w2: (H, 1); b2: (1, 1); out: (1, TM)
    h = jax.lax.dot_general(
        w1_ref[...], x_ref[...],
        dimension_numbers=(((1,), (1,)), ((), ())),      # contract on D
        preferred_element_type=jnp.float32)              # (H, TM)
    h = jnp.maximum(h + b1_ref[...], 0.0)
    z = jnp.sum(h * w2_ref[...], axis=0, keepdims=True) + b2_ref[...]   # (1, TM)
    # torch.nn.Softplus(beta=1, threshold=20)
    out_ref[...] = jnp.where(z > 20.0, z, jnp.log1p(jnp.exp(jnp.minimum(z, 20.0))))


def duration_mlp(x, params):
    w1, b1, w2, b2 = params          # w1:(D,H) b1:(1,H) w2:(H,1) b2:(1,1)
    B, T, D = x.shape
    H = w1.shape[1]
    N = B * T
    if N >= 4096:
        TM = 1024
    elif N >= 512:
        TM = 512
    else:
        TM = max(8, _round_up(N, 8))
    N_pad = _round_up(N, TM)

    x2d = x.reshape(N, D)                       # no activation transpose
    if N_pad != N:
        x2d = jnp.pad(x2d, ((0, N_pad - N), (0, 0)))
    w1T = jnp.transpose(w1)                     # tiny (H, D) weight, once
    b1c = b1.reshape(H, 1)
    w2c = w2.reshape(H, 1)
    b2c = b2.reshape(1, 1)

    out = pl.pallas_call(
        _duration_mlp_kernel,
        out_shape=jax.ShapeDtypeStruct((1, N_pad), jnp.float32),
        grid=(N_pad // TM,),
        in_specs=[
            pl.BlockSpec((TM, D), lambda i: (i, 0)),
            pl.BlockSpec((H, D), lambda i: (0, 0)),
            pl.BlockSpec((H, 1), lambda i: (0, 0)),
            pl.BlockSpec((H, 1), lambda i: (0, 0)),
            pl.BlockSpec((1, 1), lambda i: (0, 0)),
        ],
        out_specs=pl.BlockSpec((1, TM), lambda i: (0, i)),
        compiler_params=pltpu.CompilerParams(dimension_semantics=("parallel",)),
        cost_estimate=pl.CostEstimate(
            flops=2 * N_pad * H * (D + 2),
            transcendentals=2 * N_pad,
            bytes_accessed=4 * (N_pad * D + N_pad + D * H + 2 * H + 1)),
    )(x2d, w1T, b1c, w2c, b2c)
    return out[0, :N].reshape(B, T)


# ---------------------------------------------------------------------------
# Kernel 2: expansion.  Output frame p blends source frames floor(pos[p]) and
# floor(pos[p])+1 with tent weights max(0, 1 - |col - pos[p]|); pos = -1 marks
# a zero (padding) row.  Per-tile source windows (scalar-prefetched starts)
# shrink the MXU contraction from T to T_WIN; operands go to the MXU in bf16
# with f32 accumulation.
# ---------------------------------------------------------------------------
def _expand_kernel(ws_ref, pos_ref, x_ref, out_ref, *, t_win):
    t_full = x_ref.shape[0]
    tp = pos_ref.shape[0]
    ws = ws_ref[pl.program_id(1)]                                # window start
    if t_win < t_full:
        xw = x_ref[pl.ds(pl.multiple_of(ws, 8), t_win), :]       # (T_WIN, D)
    else:
        xw = x_ref[...]                                          # full T
    pos = pos_ref[...] - ws.astype(jnp.float32)                  # rebased (tp,1)
    cols = jax.lax.broadcasted_iota(jnp.int32, (tp, t_win), 1).astype(jnp.float32)
    w = jnp.maximum(1.0 - jnp.abs(cols - pos), 0.0)              # tent lerp row
    out_ref[...] = jnp.dot(
        w.astype(jnp.bfloat16), xw.astype(jnp.bfloat16),
        preferred_element_type=jnp.float32).astype(out_ref.dtype)


def expand(x, win_starts, pos, total_length, tile_p, t_win):
    B, T_pad, D = x.shape
    P_pad = pos.shape[0]
    n_tiles = P_pad // tile_p
    kernel = functools.partial(_expand_kernel, t_win=t_win)
    out = pl.pallas_call(
        kernel,
        out_shape=jax.ShapeDtypeStruct((B, P_pad, D), jnp.float32),
        grid_spec=pltpu.PrefetchScalarGridSpec(
            num_scalar_prefetch=1,                 # per-tile window starts (SMEM)
            grid=(B, n_tiles),
            in_specs=[
                pl.BlockSpec((tile_p, 1), lambda b, p, ws: (p, 0)),
                pl.BlockSpec((None, T_pad, D), lambda b, p, ws: (b, 0, 0)),
            ],
            out_specs=pl.BlockSpec((None, tile_p, D), lambda b, p, ws: (b, p, 0)),
        ),
        compiler_params=pltpu.CompilerParams(
            dimension_semantics=("parallel", "parallel"),
            vmem_limit_bytes=48 * 1024 * 1024,     # safe on v5e/v6e/v7x
        ),
        cost_estimate=pl.CostEstimate(
            flops=2 * B * P_pad * t_win * D + 4 * B * P_pad * t_win,
            transcendentals=0,
            bytes_accessed=4 * (B * T_pad * D + P_pad + n_tiles + B * P_pad * D)),
    )(win_starts, pos, x)
    if P_pad != total_length:
        out = out[:, :total_length, :]
    return out


# ---------------------------------------------------------------------------
# Parameter init (PyTorch nn.Linear default: U(-1/sqrt(fan_in), 1/sqrt(fan_in)))
# ---------------------------------------------------------------------------
def init_params(key, d_model):
    h = d_model // 2
    k1, k2, k3, k4 = jax.random.split(key, 4)
    b1_bound = 1.0 / math.sqrt(d_model)
    b2_bound = 1.0 / math.sqrt(h)
    w1 = jax.random.uniform(k1, (d_model, h), jnp.float32, -b1_bound, b1_bound)
    b1 = jax.random.uniform(k2, (1, h), jnp.float32, -b1_bound, b1_bound)
    w2 = jax.random.uniform(k3, (h, 1), jnp.float32, -b2_bound, b2_bound)
    b2 = jax.random.uniform(k4, (1, 1), jnp.float32, -b2_bound, b2_bound)
    return w1, b1, w2, b2


# ---------------------------------------------------------------------------
# Host-side schedule (O(P) numpy, mirrors the reference loop semantics):
# per-element int() truncation of batch-0 durations, alpha = j/dur towards the
# next frame, pure repeat for the last frame.
# ---------------------------------------------------------------------------
def _build_schedule(dp, T):
    durs = np.maximum(np.asarray(dp[0], dtype=np.float64).astype(np.int64), 0)
    filled = int(durs.sum())
    src = np.repeat(np.arange(T, dtype=np.int32), durs)                  # (filled,)
    starts = np.cumsum(durs) - durs
    within = (np.arange(filled, dtype=np.float32)
              - np.repeat(starts, durs).astype(np.float32))
    dd = np.repeat(durs, durs).astype(np.float32)
    alpha = within / dd if filled > 0 else np.zeros((0,), np.float32)
    if filled > 0:
        alpha[src == (T - 1)] = 0.0                # last frame: repeat, no lerp
    return src, alpha.astype(np.float32), filled


def _pick_tile_p(total_length, T_pad, D):
    if total_length < 512:
        return max(8, _round_up(total_length, 8))
    budget = 40 * 1024 * 1024                      # fits v7x's 64 MiB VMEM
    fixed = 2 * T_pad * D * 4                      # resident x block (dbl-buf)
    per_row = 2 * D * 4 + T_pad * 4 + 64           # out (dbl-buf) + w build + pos
    max_tp = max(256, (budget - fixed) // per_row)
    cap = _round_up(total_length, 256)
    for cand in (2048, 1024, 512, 256):            # multiples of 256 (MXU rows)
        if cand <= max_tp and cand <= cap:
            return cand
    return 256


def _build_windows(src, filled, T, T_pad, tile_p, n_tiles):
    """Per-P-tile aligned source window starts and a common window size."""
    ws = np.zeros((n_tiles,), dtype=np.int32)
    spans, bounds = [], []
    for t in range(n_tiles):
        a = t * tile_p
        b = min((t + 1) * tile_p, filled)
        if a >= b:                                  # pure-padding tile
            bounds.append(None)
            continue
        lo = int(src[a])                            # src is monotone
        hi = min(int(src[b - 1]) + 1, T - 1)        # include lerp neighbour
        lo_a = (lo // 8) * 8                        # sublane-aligned start
        bounds.append((lo_a, hi))
        spans.append(hi - lo_a + 1)
    if not spans:
        return ws, T_pad
    t_win = _round_up(max(spans), 8)
    if t_win >= T_pad:
        return ws, T_pad                            # no windowing needed
    for t, bd in enumerate(bounds):
        if bd is not None:
            ws[t] = min(bd[0], T_pad - t_win)       # stays aligned (both mult of 8)
    return ws, t_win


# ---------------------------------------------------------------------------
# Forward pass (matches the reference module's semantics)
# ---------------------------------------------------------------------------
def length_regulator_forward(x, params, duration_target=None, rng_key=None):
    B, T, D = x.shape

    if duration_target is None:
        # Inference path: the reference overwrites the MLP output with synthetic
        # durations, so the duration-MLP kernel is skipped (identical outputs).
        if rng_key is None:
            rng_key = jax.random.PRNGKey(0)
        base = np.full((B, T), 20.0, dtype=np.float32)
        if T > 2:
            base[:, 0] = 10.0
            base[:, 1:-1] = 30.0
            base[:, -1] = 15.0
        rand = jax.random.uniform(rng_key, (B, T), dtype=jnp.float32)
        duration_pred = jnp.round(jnp.asarray(base) * (0.8 + 0.4 * rand))
    else:
        # Training path: durations from the MLP kernel.  Like the reference,
        # duration_target only selects the mode; its values are never used.
        duration_pred = duration_mlp(x, params)

    # Dynamic output length -> host sync (reference uses .item()); only O(P)
    # pos / window tables are built here, no dense (P, T) weight matrix.
    dp = np.asarray(jax.device_get(duration_pred), dtype=np.float64)
    total_length = int(dp.sum())         # matches int(duration_pred.sum().item())
    if total_length <= 0:
        return jnp.zeros((B, 0, D), jnp.float32), duration_pred

    src, alpha, filled = _build_schedule(dp, T)

    T_pad = _round_up(T, 8)
    tile_p = _pick_tile_p(total_length, T_pad, D)
    P_pad = _round_up(total_length, tile_p)
    n_tiles = P_pad // tile_p

    pos_full = np.full((P_pad, 1), -1.0, dtype=np.float32)   # -1 => zero row
    if filled > 0:
        pos_full[:filled, 0] = src.astype(np.float32) + alpha

    win_starts, t_win = _build_windows(src, filled, T, T_pad, tile_p, n_tiles)

    x_in = x if T_pad == T else jnp.pad(x, ((0, 0), (0, T_pad - T), (0, 0)))

    expanded = expand(x_in, jnp.asarray(win_starts), jnp.asarray(pos_full),
                      total_length, tile_p, t_win)
    return expanded, duration_pred


def _reference_expand(xs, dp, total, T):
    """Host recompute of the PyTorch loop for verification."""
    B, _, D = xs.shape
    ref = np.zeros((B, total, D), np.float32)
    cur = 0
    for i in range(T):
        dur = int(dp[0, i])
        if dur > 0:
            if i < T - 1:
                for j in range(dur):
                    a = j / dur
                    ref[:, cur + j] = (1 - a) * xs[:, i] + a * xs[:, i + 1]
            else:
                ref[:, cur:cur + dur] = xs[:, i:i + 1]
            cur += dur
    return ref


if __name__ == "__main__":
    B, T, D = 2, 8, 32

    root = jax.random.PRNGKey(0)
    kx, kp, kr = jax.random.split(root, 3)

    x = jax.random.normal(kx, (B, T, D), dtype=jnp.float32)
    params = init_params(kp, D)

    # --- Inference path (duration_target=None): synthetic durations + expand kernel
    expanded, duration_pred = length_regulator_forward(x, params, None, rng_key=kr)
    jax.block_until_ready(expanded)
    jax.block_until_ready(duration_pred)

    assert duration_pred.shape == (B, T)
    dp = np.asarray(duration_pred, dtype=np.float64)
    total = int(dp.sum())
    assert expanded.shape == (B, total, D)
    ref = _reference_expand(np.asarray(x), dp, total, T)
    np.testing.assert_allclose(np.asarray(expanded), ref, rtol=5e-2, atol=5e-2)

    # --- Training path (duration_target given): exercises the duration-MLP kernel
    dur_tgt = jnp.ones((B, T), jnp.float32)   # mode flag only (as in the reference)
    expanded_t, duration_pred_t = length_regulator_forward(x, params, dur_tgt)
    jax.block_until_ready(duration_pred_t)
    jax.block_until_ready(expanded_t)

    assert duration_pred_t.shape == (B, T)
    total_t = int(np.asarray(duration_pred_t, dtype=np.float64).sum())
    assert expanded_t.shape == (B, total_t, D)

    # reference MLP (numpy) check
    xs = np.asarray(x)
    w1n, b1n, w2n, b2n = (np.asarray(p, dtype=np.float64) for p in params)
    h_ref = np.maximum(xs.reshape(B * T, D) @ w1n + b1n, 0.0)
    z_ref = h_ref @ w2n + b2n
    sp_ref = np.where(z_ref > 20.0, z_ref, np.log1p(np.exp(np.minimum(z_ref, 20.0))))
    np.testing.assert_allclose(np.asarray(duration_pred_t),
                               sp_ref.reshape(B, T).astype(np.float32),
                               rtol=5e-2, atol=5e-2)
    assert bool(np.all(np.asarray(duration_pred_t) >= 0.0))   # softplus >= 0

    # --- Larger inference-path check: exercises the windowed-contraction path
    B2, T2, D2 = 1, 64, 32
    kr2 = jax.random.PRNGKey(1)
    kx2, kr2 = jax.random.split(kr2)
    x2 = jax.random.normal(kx2, (B2, T2, D2), dtype=jnp.float32)
    exp2, dp2 = length_regulator_forward(x2, params, None, rng_key=kr2)
    jax.block_until_ready(exp2)
    dp2n = np.asarray(dp2, dtype=np.float64)
    tot2 = int(dp2n.sum())
    assert exp2.shape == (B2, tot2, D2)
    ref2 = _reference_expand(np.asarray(x2), dp2n, tot2, T2)
    np.testing.assert_allclose(np.asarray(exp2), ref2, rtol=5e-2, atol=5e-2)

    print("KERNEL_OK")
</pallas_src>

<mosaic_0001>
module attributes {stable_mosaic.version = 11 : i64} {
  func.func @_expand_kernel(%arg0: i32, %arg1: i32, %arg2: memref<1xi32, #tpu.memory_space<smem>>, %arg3: memref<416x1xf32, #tpu.memory_space<vmem>>, %arg4: memref<1x8x32xf32, #tpu.memory_space<vmem>>, %arg5: memref<1x416x32xf32, #tpu.memory_space<vmem>>) attributes {dimension_semantics = [#tpu.dimension_semantics<parallel>, #tpu.dimension_semantics<parallel>], iteration_bounds = array<i64: 2, 1>, scalar_prefetch = 1 : i64, scratch_operands = 0 : i64, tpu.core_type = #tpu.core_type<tc>, window_params = [{transform_indices = @transform_0, window_bounds = array<i64: 416, 1>}, {transform_indices = @transform_1, window_bounds = array<i64: 1, 8, 32>}, {transform_indices = @transform_2, window_bounds = array<i64: 1, 416, 32>}]} {
    %0 = arith.index_cast %arg1 : i32 to index
    %1 = memref.load %arg2[%0] : memref<1xi32, #tpu.memory_space<smem>>
    %c0 = arith.constant 0 : index
    %c0_0 = arith.constant 0 : index
    %c0_1 = arith.constant 0 : index
    %2 = vector.load %arg4[%c0, %c0_0, %c0_1] : memref<1x8x32xf32, #tpu.memory_space<vmem>>, vector<1x8x32xf32>
    %3 = vector.shape_cast %2 : vector<1x8x32xf32> to vector<8x32xf32>
    %c0_2 = arith.constant 0 : index
    %c0_3 = arith.constant 0 : index
    %4 = vector.load %arg3[%c0_2, %c0_3] : memref<416x1xf32, #tpu.memory_space<vmem>>, vector<416x1xf32>
    %5 = arith.sitofp %1 : i32 to f32
    %6 = vector.broadcast %5 : f32 to vector<416x1xf32>
    %7 = arith.subf %4, %6 : vector<416x1xf32>
    %8 = tpu.iota {dimensions = array<i32: 1>} : vector<416x8xi32>
    %9 = arith.sitofp %8 : vector<416x8xi32> to vector<416x8xf32>
    %10 = vector.broadcast %7 : vector<416x1xf32> to vector<416x8xf32>
    %11 = arith.subf %9, %10 : vector<416x8xf32>
    %12 = math.absf %11 : vector<416x8xf32>
    %cst = arith.constant 1.000000e+00 : f32
    %13 = vector.broadcast %cst : f32 to vector<416x8xf32>
    %14 = arith.subf %13, %12 : vector<416x8xf32>
    %cst_4 = arith.constant 0.000000e+00 : f32
    %15 = vector.broadcast %cst_4 : f32 to vector<416x8xf32>
    %16 = arith.maximumf %14, %15 : vector<416x8xf32>
    %17 = arith.truncf %16 : vector<416x8xf32> to vector<416x8xbf16>
    %18 = arith.truncf %3 : vector<8x32xf32> to vector<8x32xbf16>
    %cst_5 = arith.constant dense<0.000000e+00> : vector<416x32xf32>
    %19 = tpu.matmul %17, %18, %cst_5 {dimension_numbers = #tpu.dot_dimension_numbers<[1], [0], [0], [1], [0, 0, 1, 1], [], []>} : vector<416x8xbf16>, vector<8x32xbf16>, vector<416x32xf32> -> vector<416x32xf32>
    %c0_6 = arith.constant 0 : index
    %c0_7 = arith.constant 0 : index
    %c0_8 = arith.constant 0 : index
    %20 = vector.load %arg5[%c0_6, %c0_7, %c0_8] : memref<1x416x32xf32, #tpu.memory_space<vmem>>, vector<1x416x32xf32>
    %21 = vector.shape_cast %20 : vector<1x416x32xf32> to vector<416x32xf32>
    %22 = vector.shape_cast %19 : vector<416x32xf32> to vector<1x416x32xf32>
    tpu.vector_store %arg5[%c0_6, %c0_7, %c0_8], %22 {strides = array<i32>} : memref<1x416x32xf32, #tpu.memory_space<vmem>>, vector<1x416x32xf32>,
    return
  }
  func.func @transform_0(%arg0: i32, %arg1: i32, %arg2: memref<1xi32, #tpu.memory_space<smem>>) -> (i32, i32) {
    %c0_i32 = arith.constant 0 : i32
    %c0_i32_0 = arith.constant 0 : i32
    return %arg1, %c0_i32 : i32, i32
  }
  func.func @transform_1(%arg0: i32, %arg1: i32, %arg2: memref<1xi32, #tpu.memory_space<smem>>) -> (i32, i32, i32) {
    %c0_i32 = arith.constant 0 : i32
    %c0_i32_0 = arith.constant 0 : i32
    %c0_i32_1 = arith.constant 0 : i32
    return %arg0, %c0_i32, %c0_i32_0 : i32, i32, i32
  }
  func.func @transform_2(%arg0: i32, %arg1: i32, %arg2: memref<1xi32, #tpu.memory_space<smem>>) -> (i32, i32, i32) {
    %c0_i32 = arith.constant 0 : i32
    %c0_i32_0 = arith.constant 0 : i32
    return %arg0, %arg1, %c0_i32 : i32, i32, i32
  }
}

</mosaic_0001>

<llo_original>
// kernel: tpu_custom_call.1
$region0: #{tpu_custom_call.1}
  #allocation0 [shape = 'u32[]', space=smem, size = 0x4, offset = 0x4, fixed_abs, tag = 'smem constant byte address 0x4 - core index']
  #allocation1 [shape = 'u32[144,128]{1,0:T(1,128)}', space=vmem, size = 0x12000, scoped, tag = 'internal scratch']
  #allocation2 [shape = 's32[1]{0}', space=sflag, size = 0x4, scoped, tag = 'scoped memory for tpu_custom_call.1']
  #allocation3 [shape = 's32[1]{0:T(128)S(6)}', space=smem, size = 0x200, scoped, tag = 'prefetched SMEM operand 0']
  %s0 = inlined_call_operand.<no memory space> [shape: s32[1], index: 0, kind: input, shape index: {}]
  %s1 = inlined_call_operand.vmem [shape: f32[416,1], index: 1, kind: input, shape index: {}]
  %s2 = inlined_call_operand.vmem [shape: f32[2,8,32], index: 2, kind: input, shape index: {}]
  %s3 = inlined_call_operand.vmem [shape: f32[2,416,32], index: 3, kind: output, shape index: {}]
  %s4 = sld [smem:[#allocation0]]
  $region41: #{tpu_custom_call.1} parent=0
    _
  %s6 = ssub.s32 1, %s4
  %s7 = scalar_select 0, %s6, %s4
  %8 = sst [smem:[#allocation3]] %s0
  loop: start=0, step=1, limit=4
  $region2: #{tpu_custom_call.1} parent=0 // loop_pre_header
    _
  $region3: #{tpu_custom_call.1} parent=0 // loop_header
    %s10 = sphi 0, %s14
    %p11 = scmp.ge.s32.totalorder %s10, 4
    %s17 = sphi 0, %s29
    %s18 = sphi 0, %s25
    %s19 = sphi 0, %s17
    %s20 = sphi 0, %s18
    %s21 = sphi 0, %s19
    %s22 = sphi 0, %s20
    %s32 = sphi 0, %s34
    %s35 = sphi 0, %s32
    %s36 = sphi 0, %s35
    %s52 = sphi 0, %s36
    %s58 = sphi 0, %s60
    %s61 = sphi 0, %s58
    %s62 = sphi 0, %s61
    %s78 = sphi 0, %s62
    %s86 = sphi 0, %s88
    %s89 = sphi 0, %s86
    %s90 = sphi 0, %s89
    %s106 = sphi 0, %s90
  $region4: #{tpu_custom_call.1} parent=0 // loop_header_branch
    %13 = sbr.rel (%p11) target = $region8
  $region5: #{tpu_custom_call.1} parent=0 // loop_body
    %s15 = ssub.s32 %s10, 1
    %s16 = ssub.s32 %s10, 2
    %s23 = sadd.s32 1, %s18
    %p24 = scmp.ge.s32.totalorder %s23, 1
    %s25 = scalar_select %p24, 0, %s23
    %s26 = sadd.s32 1, %s17
    %s27 = scalar_select %p24, %s26, %s17
    %p28 = scmp.ge.s32.totalorder %s27, 2
    %s29 = scalar_select %p28, 0, %s27
    %s30 = ssub.s32 %s18, %s25
    %p31 = scmp.eq.s32.totalorder %s30, 0
    %s33 = sadd.s32 %s32, 1
    %s34 = scalar_select %p31, %s32, %s33
    %p37 = pneg %p31
    %p38 = scmp.eq.s32.totalorder %s10, 1
    %p39 = por %p37, %p38
    %p40 = scmp.ne.s32.totalorder %s32, %s35
    %p41 = scmp.eq.s32.totalorder %s10, 0
    %p42 = por %p40, %p41
    %p43 = scmp.ne.s32.totalorder %s32, %s35
    %p44 = scmp.eq.s32.totalorder %s15, 1
    %p45 = por %p43, %p44
    %p46 = scmp.ne.s32.totalorder %s35, %s36
    %p47 = scmp.eq.s32.totalorder %s15, 0
    %p48 = por %p46, %p47
    %p49 = scmp.ne.s32.totalorder %s35, %s36
    %p50 = scmp.eq.s32.totalorder %s16, 1
    %p51 = por %p49, %p50
    %p53 = scmp.ne.s32.totalorder %s36, %s52
    %p54 = scmp.eq.s32.totalorder %s16, 0
    %p55 = por %p53, %p54
    %s56 = ssub.s32 %s17, %s29
    %p57 = scmp.eq.s32.totalorder %s56, 0
    %s59 = sadd.s32 %s58, 1
    %s60 = scalar_select %p57, %s58, %s59
    %p63 = pneg %p57
    %p64 = scmp.eq.s32.totalorder %s10, 1
    %p65 = por %p63, %p64
    %p66 = scmp.ne.s32.totalorder %s58, %s61
    %p67 = scmp.eq.s32.totalorder %s10, 0
    %p68 = por %p66, %p67
    %p69 = scmp.ne.s32.totalorder %s58, %s61
    %p70 = scmp.eq.s32.totalorder %s15, 1
    %p71 = por %p69, %p70
    %p72 = scmp.ne.s32.totalorder %s61, %s62
    %p73 = scmp.eq.s32.totalorder %s15, 0
    %p74 = por %p72, %p73
    %p75 = scmp.ne.s32.totalorder %s61, %s62
    %p76 = scmp.eq.s32.totalorder %s16, 1
    %p77 = por %p75, %p76
    %p79 = scmp.ne.s32.totalorder %s62, %s78
    %p80 = scmp.eq.s32.totalorder %s16, 0
    %p81 = por %p79, %p80
    %s82 = ssub.s32 %s17, %s29
    %s83 = ssub.s32 %s18, %s25
    %s84 = sor.u32 %s82, %s83
    %p85 = scmp.eq.s32.totalorder %s84, 0
    %s87 = sadd.s32 %s86, 1
    %s88 = scalar_select %p85, %s86, %s87
    %p91 = pneg %p85
    %p92 = scmp.eq.s32.totalorder %s10, 1
    %p93 = por %p91, %p92
    %p94 = scmp.ne.s32.totalorder %s86, %s89
    %p95 = scmp.eq.s32.totalorder %s10, 0
    %p96 = por %p94, %p95
    %p97 = scmp.ne.s32.totalorder %s86, %s89
    %p98 = scmp.eq.s32.totalorder %s15, 1
    %p99 = por %p97, %p98
    %p100 = scmp.ne.s32.totalorder %s89, %s90
    %p101 = scmp.eq.s32.totalorder %s15, 0
    %p102 = por %p100, %p101
    %p103 = scmp.ne.s32.totalorder %s89, %s90
    %p104 = scmp.eq.s32.totalorder %s16, 1
    %p105 = por %p103, %p104
    %p107 = scmp.ne.s32.totalorder %s90, %s106
    %p108 = scmp.eq.s32.totalorder %s16, 0
    %p109 = por %p107, %p108
    %p110 = scmp.le.s32.totalorder 1, %s10
    %p111 = scmp.lt.s32.totalorder %s10, 3
    %p112 = pnand %p110, %p111
    %p113 = pneg %p112
    // Predicated region
    $region9: #{tpu_custom_call.1} parent=5 // pred_check
      _
    $region10: #{tpu_custom_call.1} parent=5 // pred_check_branch
      %115 = sbr.rel (%p112) target = $region12
    $region11: #{tpu_custom_call.1} parent=5 // pred_region
      %s116 = ssub.s32 %s10, 1
      // Predicated region
      $region13: #{tpu_custom_call.1} parent=11 // pred_check
        %p117 = pneg %p48
      $region14: #{tpu_custom_call.1} parent=11 // pred_check_branch
        %119 = sbr.rel (%p117) target = $region16
      $region15: #{tpu_custom_call.1} parent=11 // pred_region
        %s120 = smul.u32 52, %s20
        %p121 = scmp.lt.s32.totalorder %s120, 51
        %s122 = scalar_select %p121, %s120, 51
        %s123 = smul.addr %s122, 8
        %s124 = scalar_lea.vmem %s1, %s123
        %s125 = smul.u32 52, %s20
      $region16: #{tpu_custom_call.1} parent=11 // pred_fallthru
        _
    $region12: #{tpu_custom_call.1} parent=5 // pred_fallthru
      _
    %p126 = scmp.lt.s32.totalorder %s10, 2
    // Predicated region
    $region17: #{tpu_custom_call.1} parent=5 // pred_check
      %p127 = pneg %p126
    $region18: #{tpu_custom_call.1} parent=5 // pred_check_branch
      %129 = sbr.rel (%p127) target = $region20
    $region19: #{tpu_custom_call.1} parent=5 // pred_region
      // Predicated region
      $region21: #{tpu_custom_call.1} parent=19 // pred_check
        %p130 = pneg %p68
      $region22: #{tpu_custom_call.1} parent=19 // pred_check_branch
        %132 = sbr.rel (%p130) target = $region24
      $region23: #{tpu_custom_call.1} parent=19 // pred_region
        %p133 = scmp.lt.s32.totalorder %s17, 1
        %s134 = scalar_select %p133, %s17, 1
        %s135 = smul.addr %s134, 8
        %s136 = scalar_lea.vmem %s2, %s135
      $region24: #{tpu_custom_call.1} parent=19 // pred_fallthru
        _
    $region20: #{tpu_custom_call.1} parent=5 // pred_fallthru
      _
    %p137 = scmp.le.s32.totalorder 1, %s10
    %p138 = scmp.lt.s32.totalorder %s10, 3
    %p139 = pnand %p137, %p138
    %p140 = pneg %p139
    // Predicated region
    $region25: #{tpu_custom_call.1} parent=5 // pred_check
      _
    $region26: #{tpu_custom_call.1} parent=5 // pred_check_branch
      %142 = sbr.rel (%p139) target = $region28
    $region27: #{tpu_custom_call.1} parent=5 // pred_region
      %s143 = ssub.s32 %s10, 1
      %s144 = smul.u32 52, %s20
      %p145 = scmp.lt.s32.totalorder %s144, 51
      %s146 = scalar_select %p145, %s144, 51
      %s147 = smul.addr %s146, 8
      %s148 = scalar_lea.vmem %s1, %s147
      %p149 = pneg %p48
      %p150 = pneg %p45
      %p151 = scmp.lt.s32.totalorder %s19, 1
      %s152 = scalar_select %p151, %s19, 1
      %s153 = smul.addr %s152, 8
      %s154 = scalar_lea.vmem %s2, %s153
      %p155 = pneg %p74
      %p156 = pneg %p71
      %p157 = pneg %p102
      %p158 = pneg %p99
      %s159 = smul.u32 52, %s20
      %p160 = scmp.lt.s32.totalorder %s19, 1
      %s161 = scalar_select %p160, %s19, 1
      %p162 = scmp.lt.s32.totalorder %s159, 51
      %s163 = scalar_select %p162, %s159, 51
      %s164 = smul.addr %s161, 52
      %s165 = sadd.s32 %s163, %s164
      %s166 = smul.addr %s165, 8
      %s167 = scalar_lea.vmem %s3, %s166
      %s168 = smul.u32 52, %s20
      %p169 = scmp.lt.s32.totalorder %s168, 51
      %s170 = scalar_select %p169, %s168, 51
      %s171 = smul.addr %s170, 8
      %s172 = scalar_lea.vmem %s1, %s171
      %s173 = smul.u32 52, %s20
      %p174 = scmp.lt.s32.totalorder %s19, 1
      %s175 = scalar_select %p174, %s19, 1
      %s176 = smul.addr %s175, 8
      %s177 = scalar_lea.vmem %s2, %s176
      %s178 = smul.u32 52, %s20
      %p179 = scmp.lt.s32.totalorder %s19, 1
      %s180 = scalar_select %p179, %s19, 1
      %p181 = scmp.lt.s32.totalorder %s178, 51
      %s182 = scalar_select %p181, %s178, 51
      %s183 = smul.addr %s180, 52
      %s184 = sadd.s32 %s182, %s183
      %s185 = smul.addr %s184, 8
      %s186 = scalar_lea.vmem %s3, %s185
      %s187 = smul.u32 52, %s20
      %s189 = sld [smem:[#allocation3 + %s20]]
      %v190 = vld [vmem:[%s177] sm:$0xff]
      %v191 = vld [vmem:[%s172] sm:$0xff]
      %v192 = vld [vmem:[%s172 + $0x8] sm:$0xff]
      %v193 = vld [vmem:[%s172 + $0x10] sm:$0xff]
      %v194 = vld [vmem:[%s172 + $0x18] sm:$0xff]
      %v195 = vld [vmem:[%s172 + $0x20] sm:$0xff]
      %v196 = vld [vmem:[%s172 + $0x28] sm:$0xff]
      %v197 = vld [vmem:[%s172 + $0x30] sm:$0xff]
      %v198 = vld [vmem:[%s172 + $0x38] sm:$0xff]
      %v199 = vld [vmem:[%s172 + $0x40] sm:$0xff]
      %v200 = vld [vmem:[%s172 + $0x48] sm:$0xff]
      %v201 = vld [vmem:[%s172 + $0x50] sm:$0xff]
      %v202 = vld [vmem:[%s172 + $0x58] sm:$0xff]
      %v203 = vld [vmem:[%s172 + $0x60] sm:$0xff]
      %v204 = vld [vmem:[%s172 + $0x68] sm:$0xff]
      %v205 = vld [vmem:[%s172 + $0x70] sm:$0xff]
      %v206 = vld [vmem:[%s172 + $0x78] sm:$0xff]
      %v207 = vld [vmem:[%s172 + $0x80] sm:$0xff]
      %v208 = vld [vmem:[%s172 + $0x88] sm:$0xff]
      %v209 = vld [vmem:[%s172 + $0x90] sm:$0xff]
      %v210 = vld [vmem:[%s172 + $0x98] sm:$0xff]
      %v211 = vld [vmem:[%s172 + $0xa0] sm:$0xff]
      %v212 = vld [vmem:[%s172 + $0xa8] sm:$0xff]
      %v213 = vld [vmem:[%s172 + $0xb0] sm:$0xff]
      %v214 = vld [vmem:[%s172 + $0xb8] sm:$0xff]
      %v215 = vld [vmem:[%s172 + $0xc0] sm:$0xff]
      %v216 = vld [vmem:[%s172 + $0xc8] sm:$0xff]
      %v217 = vld [vmem:[%s172 + $0xd0] sm:$0xff]
      %v218 = vld [vmem:[%s172 + $0xd8] sm:$0xff]
      %v219 = vld [vmem:[%s172 + $0xe0] sm:$0xff]
      %v220 = vld [vmem:[%s172 + $0xe8] sm:$0xff]
      %v221 = vld [vmem:[%s172 + $0xf0] sm:$0xff]
      %v222 = vld [vmem:[%s172 + $0xf8] sm:$0xff]
      %v223 = vld [vmem:[%s172 + $0x100] sm:$0xff]
      %v224 = vld [vmem:[%s172 + $0x108] sm:$0xff]
      %v225 = vld [vmem:[%s172 + $0x110] sm:$0xff]
      %v226 = vld [vmem:[%s172 + $0x118] sm:$0xff]
      %v227 = vld [vmem:[%s172 + $0x120] sm:$0xff]
      %v228 = vld [vmem:[%s172 + $0x128] sm:$0xff]
      %v229 = vld [vmem:[%s172 + $0x130] sm:$0xff]
      %v230 = vld [vmem:[%s172 + $0x138] sm:$0xff]
      %v231 = vld [vmem:[%s172 + $0x140] sm:$0xff]
      %v232 = vld [vmem:[%s172 + $0x148] sm:$0xff]
      %v233 = vld [vmem:[%s172 + $0x150] sm:$0xff]
      %v234 = vld [vmem:[%s172 + $0x158] sm:$0xff]
      %v235 = vld [vmem:[%s172 + $0x160] sm:$0xff]
      %v236 = vld [vmem:[%s172 + $0x168] sm:$0xff]
      %v237 = vld [vmem:[%s172 + $0x170] sm:$0xff]
      %v238 = vld [vmem:[%s172 + $0x178] sm:$0xff]
      %v239 = vld [vmem:[%s172 + $0x180] sm:$0xff]
      %v240 = vld [vmem:[%s172 + $0x188] sm:$0xff]
      %v241 = vld [vmem:[%s172 + $0x190] sm:$0xff]
      %v242 = vld [vmem:[%s172 + $0x198] sm:$0xff]
      %s243 = scvt.s32.f32 %s189
      %v244 = vstv %s243
      %v245 = vsub.f32 %v191, %v244
      %v246 = vsub.f32 %v192, %v244
      %v247 = vsub.f32 %v193, %v244
      %v248 = vsub.f32 %v194, %v244
      %v249 = vsub.f32 %v195, %v244
      %v250 = vsub.f32 %v196, %v244
      %v251 = vsub.f32 %v197, %v244
      %v252 = vsub.f32 %v198, %v244
      %v253 = vsub.f32 %v199, %v244
      %v254 = vsub.f32 %v200, %v244
      %v255 = vsub.f32 %v201, %v244
      %v256 = vsub.f32 %v202, %v244
      %v257 = vsub.f32 %v203, %v244
      %v258 = vsub.f32 %v204, %v244
      %v259 = vsub.f32 %v205, %v244
      %v260 = vsub.f32 %v206, %v244
      %v261 = vsub.f32 %v207, %v244
      %v262 = vsub.f32 %v208, %v244
      %v263 = vsub.f32 %v209, %v244
      %v264 = vsub.f32 %v210, %v244
      %v265 = vsub.f32 %v211, %v244
      %v266 = vsub.f32 %v212, %v244
      %v267 = vsub.f32 %v213, %v244
      %v268 = vsub.f32 %v214, %v244
      %v269 = vsub.f32 %v215, %v244
      %v270 = vsub.f32 %v216, %v244
      %v271 = vsub.f32 %v217, %v244
      %v272 = vsub.f32 %v218, %v244
      %v273 = vsub.f32 %v219, %v244
      %v274 = vsub.f32 %v220, %v244
      %v275 = vsub.f32 %v221, %v244
      %v276 = vsub.f32 %v222, %v244
      %v277 = vsub.f32 %v223, %v244
      %v278 = vsub.f32 %v224, %v244
      %v279 = vsub.f32 %v225, %v244
      %v280 = vsub.f32 %v226, %v244
      %v281 = vsub.f32 %v227, %v244
      %v282 = vsub.f32 %v228, %v244
      %v283 = vsub.f32 %v229, %v244
      %v284 = vsub.f32 %v230, %v244
      %v285 = vsub.f32 %v231, %v244
      %v286 = vsub.f32 %v232, %v244
      %v287 = vsub.f32 %v233, %v244
      %v288 = vsub.f32 %v234, %v244
      %v289 = vsub.f32 %v235, %v244
      %v290 = vsub.f32 %v236, %v244
      %v291 = vsub.f32 %v237, %v244
      %v292 = vsub.f32 %v238, %v244
      %v293 = vsub.f32 %v239, %v244
      %v294 = vsub.f32 %v240, %v244
      %v295 = vsub.f32 %v241, %v244
      %v296 = vsub.f32 %v242, %v244
      %v297 = vlaneseq
      %v298 = vand.u32 %v297, 127
      %v299 = vcvt.s32.f32 %v298
      %301 = vset.pattern.permute.xlu0 0
      %302 = vperm.xlu0 %301, %v245
      %v303 = vpop.permute.xlu0 %302
      %306 = vset.pattern.permute.xlu0 0
      %307 = vperm.xlu0 %306, %v246
      %v308 = vpop.permute.xlu0 %307
      %311 = vset.pattern.permute.xlu0 0
      %312 = vperm.xlu0 %311, %v247
      %v313 = vpop.permute.xlu0 %312
      %316 = vset.pattern.permute.xlu0 0
      %317 = vperm.xlu0 %316, %v248
      %v318 = vpop.permute.xlu0 %317
      %321 = vset.pattern.permute.xlu0 0
      %322 = vperm.xlu0 %321, %v249
      %v323 = vpop.permute.xlu0 %322
      %326 = vset.pattern.permute.xlu0 0
      %327 = vperm.xlu0 %326, %v250
      %v328 = vpop.permute.xlu0 %327
      %331 = vset.pattern.permute.xlu0 0
      %332 = vperm.xlu0 %331, %v251
      %v333 = vpop.permute.xlu0 %332
      %336 = vset.pattern.permute.xlu0 0
      %337 = vperm.xlu0 %336, %v252
      %v338 = vpop.permute.xlu0 %337
      %341 = vset.pattern.permute.xlu0 0
      %342 = vperm.xlu0 %341, %v253
      %v343 = vpop.permute.xlu0 %342
      %346 = vset.pattern.permute.xlu0 0
      %347 = vperm.xlu0 %346, %v254
      %v348 = vpop.permute.xlu0 %347
      %351 = vset.pattern.permute.xlu0 0
      %352 = vperm.xlu0 %351, %v255
      %v353 = vpop.permute.xlu0 %352
      %356 = vset.pattern.permute.xlu0 0
      %357 = vperm.xlu0 %356, %v256
      %v358 = vpop.permute.xlu0 %357
      %361 = vset.pattern.permute.xlu0 0
      %362 = vperm.xlu0 %361, %v257
      %v363 = vpop.permute.xlu0 %362
      %366 = vset.pattern.permute.xlu0 0
      %367 = vperm.xlu0 %366, %v258
      %v368 = vpop.permute.xlu0 %367
      %371 = vset.pattern.permute.xlu0 0
      %372 = vperm.xlu0 %371, %v259
      %v373 = vpop.permute.xlu0 %372
      %376 = vset.pattern.permute.xlu0 0
      %377 = vperm.xlu0 %376, %v260
      %v378 = vpop.permute.xlu0 %377
      %381 = vset.pattern.permute.xlu0 0
      %382 = vperm.xlu0 %381, %v261
      %v383 = vpop.permute.xlu0 %382
      %386 = vset.pattern.permute.xlu0 0
      %387 = vperm.xlu0 %386, %v262
      %v388 = vpop.permute.xlu0 %387
      %391 = vset.pattern.permute.xlu0 0
      %392 = vperm.xlu0 %391, %v263
      %v393 = vpop.permute.xlu0 %392
      %396 = vset.pattern.permute.xlu0 0
      %397 = vperm.xlu0 %396, %v264
      %v398 = vpop.permute.xlu0 %397
      %401 = vset.pattern.permute.xlu0 0
      %402 = vperm.xlu0 %401, %v265
      %v403 = vpop.permute.xlu0 %402
      %406 = vset.pattern.permute.xlu0 0
      %407 = vperm.xlu0 %406, %v266
      %v408 = vpop.permute.xlu0 %407
      %411 = vset.pattern.permute.xlu0 0
      %412 = vperm.xlu0 %411, %v267
      %v413 = vpop.permute.xlu0 %412
      %416 = vset.pattern.permute.xlu0 0
      %417 = vperm.xlu0 %416, %v268
      %v418 = vpop.permute.xlu0 %417
      %421 = vset.pattern.permute.xlu0 0
      %422 = vperm.xlu0 %421, %v269
      %v423 = vpop.permute.xlu0 %422
      %426 = vset.pattern.permute.xlu0 0
      %427 = vperm.xlu0 %426, %v270
      %v428 = vpop.permute.xlu0 %427
      %431 = vset.pattern.permute.xlu0 0
      %432 = vperm.xlu0 %431, %v271
      %v433 = vpop.permute.xlu0 %432
      %436 = vset.pattern.permute.xlu0 0
      %437 = vperm.xlu0 %436, %v272
      %v438 = vpop.permute.xlu0 %437
      %441 = vset.pattern.permute.xlu0 0
      %442 = vperm.xlu0 %441, %v273
      %v443 = vpop.permute.xlu0 %442
      %446 = vset.pattern.permute.xlu0 0
      %447 = vperm.xlu0 %446, %v274
      %v448 = vpop.permute.xlu0 %447
      %451 = vset.pattern.permute.xlu0 0
      %452 = vperm.xlu0 %451, %v275
      %v453 = vpop.permute.xlu0 %452
      %456 = vset.pattern.permute.xlu0 0
      %457 = vperm.xlu0 %456, %v276
      %v458 = vpop.permute.xlu0 %457
      %461 = vset.pattern.permute.xlu0 0
      %462 = vperm.xlu0 %461, %v277
      %v463 = vpop.permute.xlu0 %462
      %466 = vset.pattern.permute.xlu0 0
      %467 = vperm.xlu0 %466, %v278
      %v468 = vpop.permute.xlu0 %467
      %471 = vset.pattern.permute.xlu0 0
      %472 = vperm.xlu0 %471, %v279
      %v473 = vpop.permute.xlu0 %472
      %476 = vset.pattern.permute.xlu0 0
      %477 = vperm.xlu0 %476, %v280
      %v478 = vpop.permute.xlu0 %477
      %481 = vset.pattern.permute.xlu0 0
      %482 = vperm.xlu0 %481, %v281
      %v483 = vpop.permute.xlu0 %482
      %486 = vset.pattern.permute.xlu0 0
      %487 = vperm.xlu0 %486, %v282
      %v488 = vpop.permute.xlu0 %487
      %491 = vset.pattern.permute.xlu0 0
      %492 = vperm.xlu0 %491, %v283
      %v493 = vpop.permute.xlu0 %492
      %496 = vset.pattern.permute.xlu0 0
      %497 = vperm.xlu0 %496, %v284
      %v498 = vpop.permute.xlu0 %497
      %501 = vset.pattern.permute.xlu0 0
      %502 = vperm.xlu0 %501, %v285
      %v503 = vpop.permute.xlu0 %502
      %506 = vset.pattern.permute.xlu0 0
      %507 = vperm.xlu0 %506, %v286
      %v508 = vpop.permute.xlu0 %507
      %511 = vset.pattern.permute.xlu0 0
      %512 = vperm.xlu0 %511, %v287
      %v513 = vpop.permute.xlu0 %512
      %516 = vset.pattern.permute.xlu0 0
      %517 = vperm.xlu0 %516, %v288
      %v518 = vpop.permute.xlu0 %517
      %521 = vset.pattern.permute.xlu0 0
      %522 = vperm.xlu0 %521, %v289
      %v523 = vpop.permute.xlu0 %522
      %526 = vset.pattern.permute.xlu0 0
      %527 = vperm.xlu0 %526, %v290
      %v528 = vpop.permute.xlu0 %527
      %531 = vset.pattern.permute.xlu0 0
      %532 = vperm.xlu0 %531, %v291
      %v533 = vpop.permute.xlu0 %532
      %536 = vset.pattern.permute.xlu0 0
      %537 = vperm.xlu0 %536, %v292
      %v538 = vpop.permute.xlu0 %537
      %541 = vset.pattern.permute.xlu0 0
      %542 = vperm.xlu0 %541, %v293
      %v543 = vpop.permute.xlu0 %542
      %546 = vset.pattern.permute.xlu0 0
      %547 = vperm.xlu0 %546, %v294
      %v548 = vpop.permute.xlu0 %547
      %551 = vset.pattern.permute.xlu0 0
      %552 = vperm.xlu0 %551, %v295
      %v553 = vpop.permute.xlu0 %552
      %556 = vset.pattern.permute.xlu0 0
      %557 = vperm.xlu0 %556, %v296
      %v558 = vpop.permute.xlu0 %557
      %v560 = vsub.f32 %v299, %v303
      %v561 = vsub.f32 %v299, %v308
      %v562 = vsub.f32 %v299, %v313
      %v563 = vsub.f32 %v299, %v318
      %v564 = vsub.f32 %v299, %v323
      %v565 = vsub.f32 %v299, %v328
      %v566 = vsub.f32 %v299, %v333
      %v567 = vsub.f32 %v299, %v338
      %v568 = vsub.f32 %v299, %v343
      %v569 = vsub.f32 %v299, %v348
      %v570 = vsub.f32 %v299, %v353
      %v571 = vsub.f32 %v299, %v358
      %v572 = vsub.f32 %v299, %v363
      %v573 = vsub.f32 %v299, %v368
      %v574 = vsub.f32 %v299, %v373
      %v575 = vsub.f32 %v299, %v378
      %v576 = vsub.f32 %v299, %v383
      %v577 = vsub.f32 %v299, %v388
      %v578 = vsub.f32 %v299, %v393
      %v579 = vsub.f32 %v299, %v398
      %v580 = vsub.f32 %v299, %v403
      %v581 = vsub.f32 %v299, %v408
      %v582 = vsub.f32 %v299, %v413
      %v583 = vsub.f32 %v299, %v418
      %v584 = vsub.f32 %v299, %v423
      %v585 = vsub.f32 %v299, %v428
      %v586 = vsub.f32 %v299, %v433
      %v587 = vsub.f32 %v299, %v438
      %v588 = vsub.f32 %v299, %v443
      %v589 = vsub.f32 %v299, %v448
      %v590 = vsub.f32 %v299, %v453
      %v591 = vsub.f32 %v299, %v458
      %v592 = vsub.f32 %v299, %v463
      %v593 = vsub.f32 %v299, %v468
      %v594 = vsub.f32 %v299, %v473
      %v595 = vsub.f32 %v299, %v478
      %v596 = vsub.f32 %v299, %v483
      %v597 = vsub.f32 %v299, %v488
      %v598 = vsub.f32 %v299, %v493
      %v599 = vsub.f32 %v299, %v498
      %v600 = vsub.f32 %v299, %v503
      %v601 = vsub.f32 %v299, %v508
      %v602 = vsub.f32 %v299, %v513
      %v603 = vsub.f32 %v299, %v518
      %v604 = vsub.f32 %v299, %v523
      %v605 = vsub.f32 %v299, %v528
      %v606 = vsub.f32 %v299, %v533
      %v607 = vsub.f32 %v299, %v538
      %v608 = vsub.f32 %v299, %v543
      %v609 = vsub.f32 %v299, %v548
      %v610 = vsub.f32 %v299, %v553
      %v611 = vsub.f32 %v299, %v558
      %v612 = vand.u32 2147483647, %v560
      %v613 = vand.u32 2147483647, %v561
      %v614 = vand.u32 2147483647, %v562
      %v615 = vand.u32 2147483647, %v563
      %v616 = vand.u32 2147483647, %v564
      %v617 = vand.u32 2147483647, %v565
      %v618 = vand.u32 2147483647, %v566
      %v619 = vand.u32 2147483647, %v567
      %v620 = vand.u32 2147483647, %v568
      %v621 = vand.u32 2147483647, %v569
      %v622 = vand.u32 2147483647, %v570
      %v623 = vand.u32 2147483647, %v571
      %v624 = vand.u32 2147483647, %v572
      %v625 = vand.u32 2147483647, %v573
      %v626 = vand.u32 2147483647, %v574
      %v627 = vand.u32 2147483647, %v575
      %v628 = vand.u32 2147483647, %v576
      %v629 = vand.u32 2147483647, %v577
      %v630 = vand.u32 2147483647, %v578
      %v631 = vand.u32 2147483647, %v579
      %v632 = vand.u32 2147483647, %v580
      %v633 = vand.u32 2147483647, %v581
      %v634 = vand.u32 2147483647, %v582
      %v635 = vand.u32 2147483647, %v583
      %v636 = vand.u32 2147483647, %v584
      %v637 = vand.u32 2147483647, %v585
      %v638 = vand.u32 2147483647, %v586
      %v639 = vand.u32 2147483647, %v587
      %v640 = vand.u32 2147483647, %v588
      %v641 = vand.u32 2147483647, %v589
      %v642 = vand.u32 2147483647, %v590
      %v643 = vand.u32 2147483647, %v591
      %v644 = vand.u32 2147483647, %v592
      %v645 = vand.u32 2147483647, %v593
      %v646 = vand.u32 2147483647, %v594
      %v647 = vand.u32 2147483647, %v595
      %v648 = vand.u32 2147483647, %v596
      %v649 = vand.u32 2147483647, %v597
      %v650 = vand.u32 2147483647, %v598
      %v651 = vand.u32 2147483647, %v599
      %v652 = vand.u32 2147483647, %v600
      %v653 = vand.u32 2147483647, %v601
      %v654 = vand.u32 2147483647, %v602
      %v655 = vand.u32 2147483647, %v603
      %v656 = vand.u32 2147483647, %v604
      %v657 = vand.u32 2147483647, %v605
      %v658 = vand.u32 2147483647, %v606
      %v659 = vand.u32 2147483647, %v607
      %v660 = vand.u32 2147483647, %v608
      %v661 = vand.u32 2147483647, %v609
      %v662 = vand.u32 2147483647, %v610
      %v663 = vand.u32 2147483647, %v611
      %v664 = vsub.f32 1.0, %v612
      %v665 = vsub.f32 1.0, %v613
      %v666 = vsub.f32 1.0, %v614
      %v667 = vsub.f32 1.0, %v615
      %v668 = vsub.f32 1.0, %v616
      %v669 = vsub.f32 1.0, %v617
      %v670 = vsub.f32 1.0, %v618
      %v671 = vsub.f32 1.0, %v619
      %v672 = vsub.f32 1.0, %v620
      %v673 = vsub.f32 1.0, %v621
      %v674 = vsub.f32 1.0, %v622
      %v675 = vsub.f32 1.0, %v623
      %v676 = vsub.f32 1.0, %v624
      %v677 = vsub.f32 1.0, %v625
      %v678 = vsub.f32 1.0, %v626
      %v679 = vsub.f32 1.0, %v627
      %v680 = vsub.f32 1.0, %v628
      %v681 = vsub.f32 1.0, %v629
      %v682 = vsub.f32 1.0, %v630
      %v683 = vsub.f32 1.0, %v631
      %v684 = vsub.f32 1.0, %v632
      %v685 = vsub.f32 1.0, %v633
      %v686 = vsub.f32 1.0, %v634
      %v687 = vsub.f32 1.0, %v635
      %v688 = vsub.f32 1.0, %v636
      %v689 = vsub.f32 1.0, %v637
      %v690 = vsub.f32 1.0, %v638
      %v691 = vsub.f32 1.0, %v639
      %v692 = vsub.f32 1.0, %v640
      %v693 = vsub.f32 1.0, %v641
      %v694 = vsub.f32 1.0, %v642
      %v695 = vsub.f32 1.0, %v643
      %v696 = vsub.f32 1.0, %v644
      %v697 = vsub.f32 1.0, %v645
      %v698 = vsub.f32 1.0, %v646
      %v699 = vsub.f32 1.0, %v647
      %v700 = vsub.f32 1.0, %v648
      %v701 = vsub.f32 1.0, %v649
      %v702 = vsub.f32 1.0, %v650
      %v703 = vsub.f32 1.0, %v651
      %v704 = vsub.f32 1.0, %v652
      %v705 = vsub.f32 1.0, %v653
      %v706 = vsub.f32 1.0, %v654
      %v707 = vsub.f32 1.0, %v655
      %v708 = vsub.f32 1.0, %v656
      %v709 = vsub.f32 1.0, %v657
      %v710 = vsub.f32 1.0, %v658
      %v711 = vsub.f32 1.0, %v659
      %v712 = vsub.f32 1.0, %v660
      %v713 = vsub.f32 1.0, %v661
      %v714 = vsub.f32 1.0, %v662
      %v715 = vsub.f32 1.0, %v663
      %v716 = vmax.f32 %v664, 0.0
      %v717 = vmax.f32 %v665, 0.0
      %v718 = vmax.f32 %v666, 0.0
      %v719 = vmax.f32 %v667, 0.0
      %v720 = vmax.f32 %v668, 0.0
      %v721 = vmax.f32 %v669, 0.0
      %v722 = vmax.f32 %v670, 0.0
      %v723 = vmax.f32 %v671, 0.0
      %v724 = vmax.f32 %v672, 0.0
      %v725 = vmax.f32 %v673, 0.0
      %v726 = vmax.f32 %v674, 0.0
      %v727 = vmax.f32 %v675, 0.0
      %v728 = vmax.f32 %v676, 0.0
      %v729 = vmax.f32 %v677, 0.0
      %v730 = vmax.f32 %v678, 0.0
      %v731 = vmax.f32 %v679, 0.0
      %v732 = vmax.f32 %v680, 0.0
      %v733 = vmax.f32 %v681, 0.0
      %v734 = vmax.f32 %v682, 0.0
      %v735 = vmax.f32 %v683, 0.0
      %v736 = vmax.f32 %v684, 0.0
      %v737 = vmax.f32 %v685, 0.0
      %v738 = vmax.f32 %v686, 0.0
      %v739 = vmax.f32 %v687, 0.0
      %v740 = vmax.f32 %v688, 0.0
      %v741 = vmax.f32 %v689, 0.0
      %v742 = vmax.f32 %v690, 0.0
      %v743 = vmax.f32 %v691, 0.0
      %v744 = vmax.f32 %v692, 0.0
      %v745 = vmax.f32 %v693, 0.0
      %v746 = vmax.f32 %v694, 0.0
      %v747 = vmax.f32 %v695, 0.0
      %v748 = vmax.f32 %v696, 0.0
      %v749 = vmax.f32 %v697, 0.0
      %v750 = vmax.f32 %v698, 0.0
      %v751 = vmax.f32 %v699, 0.0
      %v752 = vmax.f32 %v700, 0.0
      %v753 = vmax.f32 %v701, 0.0
      %v754 = vmax.f32 %v702, 0.0
      %v755 = vmax.f32 %v703, 0.0
      %v756 = vmax.f32 %v704, 0.0
      %v757 = vmax.f32 %v705, 0.0
      %v758 = vmax.f32 %v706, 0.0
      %v759 = vmax.f32 %v707, 0.0
      %v760 = vmax.f32 %v708, 0.0
      %v761 = vmax.f32 %v709, 0.0
      %v762 = vmax.f32 %v710, 0.0
      %v763 = vmax.f32 %v711, 0.0
      %v764 = vmax.f32 %v712, 0.0
      %v765 = vmax.f32 %v713, 0.0
      %v766 = vmax.f32 %v714, 0.0
      %v767 = vmax.f32 %v715, 0.0
      %v768 = vpack.c.bf16 %v717, %v716
      %v769 = vpack.c.bf16 %v719, %v718
      %v770 = vpack.c.bf16 %v721, %v720
      %v771 = vpack.c.bf16 %v723, %v722
      %v772 = vpack.c.bf16 %v725, %v724
      %v773 = vpack.c.bf16 %v727, %v726
      %v774 = vpack.c.bf16 %v729, %v728
      %v775 = vpack.c.bf16 %v731, %v730
      %v776 = vpack.c.bf16 %v733, %v732
      %v777 = vpack.c.bf16 %v735, %v734
      %v778 = vpack.c.bf16 %v737, %v736
      %v779 = vpack.c.bf16 %v739, %v738
      %v780 = vpack.c.bf16 %v741, %v740
      %v781 = vpack.c.bf16 %v743, %v742
      %v782 = vpack.c.bf16 %v745, %v744
      %v783 = vpack.c.bf16 %v747, %v746
      %v784 = vpack.c.bf16 %v749, %v748
      %v785 = vpack.c.bf16 %v751, %v750
      %v786 = vpack.c.bf16 %v753, %v752
      %v787 = vpack.c.bf16 %v755, %v754
      %v788 = vpack.c.bf16 %v757, %v756
      %v789 = vpack.c.bf16 %v759, %v758
      %v790 = vpack.c.bf16 %v761, %v760
      %v791 = vpack.c.bf16 %v763, %v762
      %v792 = vpack.c.bf16 %v765, %v764
      %v793 = vpack.c.bf16 %v767, %v766
      %v794 = vpack.c.bf16 %v190, %v190
      %vm795 = vcmask 64512
      %v797 = vsel %vm795, %v768, 0
      %v800 = vsel %vm795, %v769, 0
      %v803 = vsel %vm795, %v770, 0
      %v806 = vsel %vm795, %v771, 0
      %v809 = vsel %vm795, %v772, 0
      %v812 = vsel %vm795, %v773, 0
      %v815 = vsel %vm795, %v774, 0
      %v818 = vsel %vm795, %v775, 0
      %v821 = vsel %vm795, %v776, 0
      %v824 = vsel %vm795, %v777, 0
      %v827 = vsel %vm795, %v778, 0
      %v830 = vsel %vm795, %v779, 0
      %v833 = vsel %vm795, %v780, 0
      %v836 = vsel %vm795, %v781, 0
      %v839 = vsel %vm795, %v782, 0
      %v842 = vsel %vm795, %v783, 0
      %v845 = vsel %vm795, %v784, 0
      %v848 = vsel %vm795, %v785, 0
      %v851 = vsel %vm795, %v786, 0
      %v854 = vsel %vm795, %v787, 0
      %v857 = vsel %vm795, %v788, 0
      %v860 = vsel %vm795, %v789, 0
      %v863 = vsel %vm795, %v790, 0
      %v866 = vsel %vm795, %v791, 0
      %v869 = vsel %vm795, %v792, 0
      %v872 = vsel %vm795, %v793, 0
      %vm874 = vcmask 1043456
      %v876 = vsel %vm874, %v794, 0
      %878 = vmatprep.subr.bf16.mxu0 0
      %879 = vmatpush1.bf16.msra.mxu0 %v876
      %880 = vmatprep.subr.bf16.mxu0 0
      %881 = vmatpush1.bf16.msra.mxu0 0
      %882 = vmatprep.subr.bf16.mxu0 0
      %883 = vmatpush1.bf16.msra.mxu0 0
      %884 = vmatprep.subr.bf16.mxu0 0
      %885 = vmatpush1.bf16.msra.mxu0 0
      %886 = vmatprep.subr.bf16.mxu0 0
      %887 = vmatpush1.bf16.msra.mxu0 0
      %888 = vmatprep.subr.bf16.mxu0 0
      %889 = vmatpush1.bf16.msra.mxu0 0
      %890 = vmatprep.subr.bf16.mxu0 0
      %891 = vmatpush1.bf16.msra.mxu0 0
      %892 = vmatprep.subr.bf16.mxu0 0
      %893 = vmatpush1.bf16.msra.mxu0 0
      %894 = vmatprep.subr.bf16.mxu0 0
      %895 = vmatpush1.bf16.msra.mxu0 0
      %896 = vmatprep.subr.bf16.mxu0 0
      %897 = vmatpush1.bf16.msra.mxu0 0
      %898 = vmatprep.subr.bf16.mxu0 0
      %899 = vmatpush1.bf16.msra.mxu0 0
      %900 = vmatprep.subr.bf16.mxu0 0
      %901 = vmatpush1.bf16.msra.mxu0 0
      %902 = vmatprep.subr.bf16.mxu0 0
      %903 = vmatpush1.bf16.msra.mxu0 0
      %904 = vmatprep.subr.bf16.mxu0 0
      %905 = vmatpush1.bf16.msra.mxu0 0
      %906 = vmatprep.subr.bf16.mxu0 0
      %907 = vmatpush1.bf16.msra.mxu0 0
      %908 = vmatprep.subr.bf16.mxu0 0
      %909 = vmatpush1.bf16.msra.mxu0 0
      %910 = vmatprep.mubr.bf16.mxu0 0
      %911 = vmatmul.mubr.bf16.gmra.mrb[0].mxu0 %v797
      %v912 = vpop.f32.mrb[0].mxu0
      %v913 = vadd.f32 0.0, %v912
      %v914 = vpop.f32.mrb[0].mxu0
      %v915 = vpop.f32.mrb[0].mxu0
      %v916 = vadd.f32 0.0, %v915
      %v917 = vpop.f32.mrb[0].mxu0
      %918 = vmatprep.mubr.bf16.mxu0 0
      %919 = vmatmul.mubr.bf16.gmra.mrb[0].mxu0 %v800
      %v920 = vpop.f32.mrb[0].mxu0
      %v921 = vadd.f32 0.0, %v920
      %v922 = vpop.f32.mrb[0].mxu0
      %v923 = vpop.f32.mrb[0].mxu0
      %v924 = vadd.f32 0.0, %v923
      %v925 = vpop.f32.mrb[0].mxu0
      %926 = vmatprep.mubr.bf16.mxu0 0
      %927 = vmatmul.mubr.bf16.gmra.mrb[0].mxu0 %v803
      %v928 = vpop.f32.mrb[0].mxu0
      %v929 = vadd.f32 0.0, %v928
      %v930 = vpop.f32.mrb[0].mxu0
      %v931 = vpop.f32.mrb[0].mxu0
      %v932 = vadd.f32 0.0, %v931
      %v933 = vpop.f32.mrb[0].mxu0
      %934 = vmatprep.mubr.bf16.mxu0 0
      %935 = vmatmul.mubr.bf16.gmra.mrb[0].mxu0 %v806
      %v936 = vpop.f32.mrb[0].mxu0
      %v937 = vadd.f32 0.0, %v936
      %v938 = vpop.f32.mrb[0].mxu0
      %v939 = vpop.f32.mrb[0].mxu0
      %v940 = vadd.f32 0.0, %v939
      %v941 = vpop.f32.mrb[0].mxu0
      %942 = vmatprep.mubr.bf16.mxu0 0
      %943 = vmatmul.mubr.bf16.gmra.mrb[0].mxu0 %v809
      %v944 = vpop.f32.mrb[0].mxu0
      %v945 = vadd.f32 0.0, %v944
      %v946 = vpop.f32.mrb[0].mxu0
      %v947 = vpop.f32.mrb[0].mxu0
      %v948 = vadd.f32 0.0, %v947
      %v949 = vpop.f32.mrb[0].mxu0
      %950 = vmatprep.mubr.bf16.mxu0 0
      %951 = vmatmul.mubr.bf16.gmra.mrb[0].mxu0 %v812
      %v952 = vpop.f32.mrb[0].mxu0
      %v953 = vadd.f32 0.0, %v952
      %v954 = vpop.f32.mrb[0].mxu0
      %v955 = vpop.f32.mrb[0].mxu0
      %v956 = vadd.f32 0.0, %v955
      %v957 = vpop.f32.mrb[0].mxu0
      %958 = vmatprep.mubr.bf16.mxu0 0
      %959 = vmatmul.mubr.bf16.gmra.mrb[0].mxu0 %v815
      %v960 = vpop.f32.mrb[0].mxu0
      %v961 = vadd.f32 0.0, %v960
      %v962 = vpop.f32.mrb[0].mxu0
      %v963 = vpop.f32.mrb[0].mxu0
      %v964 = vadd.f32 0.0, %v963
      %v965 = vpop.f32.mrb[0].mxu0
      %966 = vmatprep.mubr.bf16.mxu0 0
      %967 = vmatmul.mubr.bf16.gmra.mrb[0].mxu0 %v818
      %v968 = vpop.f32.mrb[0].mxu0
      %v969 = vadd.f32 0.0, %v968
      %v970 = vpop.f32.mrb[0].mxu0
      %v971 = vpop.f32.mrb[0].mxu0
      %v972 = vadd.f32 0.0, %v971
      %v973 = vpop.f32.mrb[0].mxu0
      %974 = vmatprep.mubr.bf16.mxu0 0
      %975 = vmatmul.mubr.bf16.gmra.mrb[0].mxu0 %v821
      %v976 = vpop.f32.mrb[0].mxu0
      %v977 = vadd.f32 0.0, %v976
      %v978 = vpop.f32.mrb[0].mxu0
      %v979 = vpop.f32.mrb[0].mxu0
      %v980 = vadd.f32 0.0, %v979
      %v981 = vpop.f32.mrb[0].mxu0
      %982 = vmatprep.mubr.bf16.mxu0 0
      %983 = vmatmul.mubr.bf16.gmra.mrb[0].mxu0 %v824
      %v984 = vpop.f32.mrb[0].mxu0
      %v985 = vadd.f32 0.0, %v984
      %v986 = vpop.f32.mrb[0].mxu0
      %v987 = vpop.f32.mrb[0].mxu0
      %v988 = vadd.f32 0.0, %v987
      %v989 = vpop.f32.mrb[0].mxu0
      %990 = vmatprep.mubr.bf16.mxu0 0
      %991 = vmatmul.mubr.bf16.gmra.mrb[0].mxu0 %v827
      %v992 = vpop.f32.mrb[0].mxu0
      %v993 = vadd.f32 0.0, %v992
      %v994 = vpop.f32.mrb[0].mxu0
      %v995 = vpop.f32.mrb[0].mxu0
      %v996 = vadd.f32 0.0, %v995
      %v997 = vpop.f32.mrb[0].mxu0
      %998 = vmatprep.mubr.bf16.mxu0 0
      %999 = vmatmul.mubr.bf16.gmra.mrb[0].mxu0 %v830
      %v1000 = vpop.f32.mrb[0].mxu0
      %v1001 = vadd.f32 0.0, %v1000
      %v1002 = vpop.f32.mrb[0].mxu0
      %v1003 = vpop.f32.mrb[0].mxu0
      %v1004 = vadd.f32 0.0, %v1003
      %v1005 = vpop.f32.mrb[0].mxu0
      %1006 = vmatprep.mubr.bf16.mxu0 0
      %1007 = vmatmul.mubr.bf16.gmra.mrb[0].mxu0 %v833
      %v1008 = vpop.f32.mrb[0].mxu0
      %v1009 = vadd.f32 0.0, %v1008
      %v1010 = vpop.f32.mrb[0].mxu0
      %v1011 = vpop.f32.mrb[0].mxu0
      %v1012 = vadd.f32 0.0, %v1011
      %v1013 = vpop.f32.mrb[0].mxu0
      %1014 = vmatprep.mubr.bf16.mxu0 0
      %1015 = vmatmul.mubr.bf16.gmra.mrb[0].mxu0 %v836
      %v1016 = vpop.f32.mrb[0].mxu0
      %v1017 = vadd.f32 0.0, %v1016
      %v1018 = vpop.f32.mrb[0].mxu0
      %v1019 = vpop.f32.mrb[0].mxu0
      %v1020 = vadd.f32 0.0, %v1019
      %v1021 = vpop.f32.mrb[0].mxu0
      %1022 = vmatprep.mubr.bf16.mxu0 0
      %1023 = vmatmul.mubr.bf16.gmra.mrb[0].mxu0 %v839
      %v1024 = vpop.f32.mrb[0].mxu0
      %v1025 = vadd.f32 0.0, %v1024
      %v1026 = vpop.f32.mrb[0].mxu0
      %v1027 = vpop.f32.mrb[0].mxu0
      %v1028 = vadd.f32 0.0, %v1027
      %v1029 = vpop.f32.mrb[0].mxu0
      %1030 = vmatprep.mubr.bf16.mxu0 0
      %1031 = vmatmul.mubr.bf16.gmra.mrb[0].mxu0 %v842
      %v1032 = vpop.f32.mrb[0].mxu0
      %v1033 = vadd.f32 0.0, %v1032
      %v1034 = vpop.f32.mrb[0].mxu0
      %v1035 = vpop.f32.mrb[0].mxu0
      %v1036 = vadd.f32 0.0, %v1035
      %v1037 = vpop.f32.mrb[0].mxu0
      %1038 = vmatprep.mubr.bf16.mxu0 0
      %1039 = vmatmul.mubr.bf16.gmra.mrb[0].mxu0 %v845
      %v1040 = vpop.f32.mrb[0].mxu0
      %v1041 = vadd.f32 0.0, %v1040
      %v1042 = vpop.f32.mrb[0].mxu0
      %v1043 = vpop.f32.mrb[0].mxu0
      %v1044 = vadd.f32 0.0, %v1043
      %v1045 = vpop.f32.mrb[0].mxu0
      %1046 = vmatprep.mubr.bf16.mxu0 0
      %1047 = vmatmul.mubr.bf16.gmra.mrb[0].mxu0 %v848
      %v1048 = vpop.f32.mrb[0].mxu0
      %v1049 = vadd.f32 0.0, %v1048
      %v1050 = vpop.f32.mrb[0].mxu0
      %v1051 = vpop.f32.mrb[0].mxu0
      %v1052 = vadd.f32 0.0, %v1051
      %v1053 = vpop.f32.mrb[0].mxu0
      %1054 = vmatprep.mubr.bf16.mxu0 0
      %1055 = vmatmul.mubr.bf16.gmra.mrb[0].mxu0 %v851
      %v1056 = vpop.f32.mrb[0].mxu0
      %v1057 = vadd.f32 0.0, %v1056
      %v1058 = vpop.f32.mrb[0].mxu0
      %v1059 = vpop.f32.mrb[0].mxu0
      %v1060 = vadd.f32 0.0, %v1059
      %v1061 = vpop.f32.mrb[0].mxu0
      %1062 = vmatprep.mubr.bf16.mxu0 0
      %1063 = vmatmul.mubr.bf16.gmra.mrb[0].mxu0 %v854
      %v1064 = vpop.f32.mrb[0].mxu0
      %v1065 = vadd.f32 0.0, %v1064
      %v1066 = vpop.f32.mrb[0].mxu0
      %v1067 = vpop.f32.mrb[0].mxu0
      %v1068 = vadd.f32 0.0, %v1067
      %v1069 = vpop.f32.mrb[0].mxu0
      %1070 = vmatprep.mubr.bf16.mxu0 0
      %1071 = vmatmul.mubr.bf16.gmra.mrb[0].mxu0 %v857
      %v1072 = vpop.f32.mrb[0].mxu0
      %v1073 = vadd.f32 0.0, %v1072
      %v1074 = vpop.f32.mrb[0].mxu0
      %v1075 = vpop.f32.mrb[0].mxu0
      %v1076 = vadd.f32 0.0, %v1075
      %v1077 = vpop.f32.mrb[0].mxu0
      %1078 = vmatprep.mubr.bf16.mxu0 0
      %1079 = vmatmul.mubr.bf16.gmra.mrb[0].mxu0 %v860
      %v1080 = vpop.f32.mrb[0].mxu0
      %v1081 = vadd.f32 0.0, %v1080
      %v1082 = vpop.f32.mrb[0].mxu0
      %v1083 = vpop.f32.mrb[0].mxu0
      %v1084 = vadd.f32 0.0, %v1083
      %v1085 = vpop.f32.mrb[0].mxu0
      %1086 = vmatprep.mubr.bf16.mxu0 0
      %1087 = vmatmul.mubr.bf16.gmra.mrb[0].mxu0 %v863
      %v1088 = vpop.f32.mrb[0].mxu0
      %v1089 = vadd.f32 0.0, %v1088
      %v1090 = vpop.f32.mrb[0].mxu0
      %v1091 = vpop.f32.mrb[0].mxu0
      %v1092 = vadd.f32 0.0, %v1091
      %v1093 = vpop.f32.mrb[0].mxu0
      %1094 = vmatprep.mubr.bf16.mxu0 0
      %1095 = vmatmul.mubr.bf16.gmra.mrb[0].mxu0 %v866
      %v1096 = vpop.f32.mrb[0].mxu0
      %v1097 = vadd.f32 0.0, %v1096
      %v1098 = vpop.f32.mrb[0].mxu0
      %v1099 = vpop.f32.mrb[0].mxu0
      %v1100 = vadd.f32 0.0, %v1099
      %v1101 = vpop.f32.mrb[0].mxu0
      %1102 = vmatprep.mubr.bf16.mxu0 0
      %1103 = vmatmul.mubr.bf16.gmra.mrb[0].mxu0 %v869
      %v1104 = vpop.f32.mrb[0].mxu0
      %v1105 = vadd.f32 0.0, %v1104
      %v1106 = vpop.f32.mrb[0].mxu0
      %v1107 = vpop.f32.mrb[0].mxu0
      %v1108 = vadd.f32 0.0, %v1107
      %v1109 = vpop.f32.mrb[0].mxu0
      %1110 = vmatprep.mubr.bf16.mxu0 0
      %1111 = vmatmul.mubr.bf16.gmra.mrb[0].mxu0 %v872
      %v1112 = vpop.f32.mrb[0].mxu0
      %v1113 = vadd.f32 0.0, %v1112
      %v1114 = vpop.f32.mrb[0].mxu0
      %v1115 = vpop.f32.mrb[0].mxu0
      %v1116 = vadd.f32 0.0, %v1115
      %v1117 = vpop.f32.mrb[0].mxu0
      %1118 = vdwg.mxu0
      %vm1119 = vcmask 261120
      %1120 = vst.msk [vmem:[%s186] sm:$0xff] %vm1119, %v913
      %1121 = vst.msk [vmem:[%s186 + $0x8] sm:$0xff] %vm1119, %v916
      %1122 = vst.msk [vmem:[%s186 + $0x10] sm:$0xff] %vm1119, %v921
      %1123 = vst.msk [vmem:[%s186 + $0x18] sm:$0xff] %vm1119, %v924
      %1124 = vst.msk [vmem:[%s186 + $0x20] sm:$0xff] %vm1119, %v929
      %1125 = vst.msk [vmem:[%s186 + $0x28] sm:$0xff] %vm1119, %v932
      %1126 = vst.msk [vmem:[%s186 + $0x30] sm:$0xff] %vm1119, %v937
      %1127 = vst.msk [vmem:[%s186 + $0x38] sm:$0xff] %vm1119, %v940
      %1128 = vst.msk [vmem:[%s186 + $0x40] sm:$0xff] %vm1119, %v945
      %1129 = vst.msk [vmem:[%s186 + $0x48] sm:$0xff] %vm1119, %v948
      %1130 = vst.msk [vmem:[%s186 + $0x50] sm:$0xff] %vm1119, %v953
      %1131 = vst.msk [vmem:[%s186 + $0x58] sm:$0xff] %vm1119, %v956
      %1132 = vst.msk [vmem:[%s186 + $0x60] sm:$0xff] %vm1119, %v961
      %1133 = vst.msk [vmem:[%s186 + $0x68] sm:$0xff] %vm1119, %v964
      %1134 = vst.msk [vmem:[%s186 + $0x70] sm:$0xff] %vm1119, %v969
      %1135 = vst.msk [vmem:[%s186 + $0x78] sm:$0xff] %vm1119, %v972
      %1136 = vst.msk [vmem:[%s186 + $0x80] sm:$0xff] %vm1119, %v977
      %1137 = vst.msk [vmem:[%s186 + $0x88] sm:$0xff] %vm1119, %v980
      %1138 = vst.msk [vmem:[%s186 + $0x90] sm:$0xff] %vm1119, %v985
      %1139 = vst.msk [vmem:[%s186 + $0x98] sm:$0xff] %vm1119, %v988
      %1140 = vst.msk [vmem:[%s186 + $0xa0] sm:$0xff] %vm1119, %v993
      %1141 = vst.msk [vmem:[%s186 + $0xa8] sm:$0xff] %vm1119, %v996
      %1142 = vst.msk [vmem:[%s186 + $0xb0] sm:$0xff] %vm1119, %v1001
      %1143 = vst.msk [vmem:[%s186 + $0xb8] sm:$0xff] %vm1119, %v1004
      %1144 = vst.msk [vmem:[%s186 + $0xc0] sm:$0xff] %vm1119, %v1009
      %1145 = vst.msk [vmem:[%s186 + $0xc8] sm:$0xff] %vm1119, %v1012
      %1146 = vst.msk [vmem:[%s186 + $0xd0] sm:$0xff] %vm1119, %v1017
      %1147 = vst.msk [vmem:[%s186 + $0xd8] sm:$0xff] %vm1119, %v1020
      %1148 = vst.msk [vmem:[%s186 + $0xe0] sm:$0xff] %vm1119, %v1025
      %1149 = vst.msk [vmem:[%s186 + $0xe8] sm:$0xff] %vm1119, %v1028
      %1150 = vst.msk [vmem:[%s186 + $0xf0] sm:$0xff] %vm1119, %v1033
      %1151 = vst.msk [vmem:[%s186 + $0xf8] sm:$0xff] %vm1119, %v1036
      %1152 = vst.msk [vmem:[%s186 + $0x100] sm:$0xff] %vm1119, %v1041
      %1153 = vst.msk [vmem:[%s186 + $0x108] sm:$0xff] %vm1119, %v1044
      %1154 = vst.msk [vmem:[%s186 + $0x110] sm:$0xff] %vm1119, %v1049
      %1155 = vst.msk [vmem:[%s186 + $0x118] sm:$0xff] %vm1119, %v1052
      %1156 = vst.msk [vmem:[%s186 + $0x120] sm:$0xff] %vm1119, %v1057
      %1157 = vst.msk [vmem:[%s186 + $0x128] sm:$0xff] %vm1119, %v1060
      %1158 = vst.msk [vmem:[%s186 + $0x130] sm:$0xff] %vm1119, %v1065
      %1159 = vst.msk [vmem:[%s186 + $0x138] sm:$0xff] %vm1119, %v1068
      %1160 = vst.msk [vmem:[%s186 + $0x140] sm:$0xff] %vm1119, %v1073
      %1161 = vst.msk [vmem:[%s186 + $0x148] sm:$0xff] %vm1119, %v1076
      %1162 = vst.msk [vmem:[%s186 + $0x150] sm:$0xff] %vm1119, %v1081
      %1163 = vst.msk [vmem:[%s186 + $0x158] sm:$0xff] %vm1119, %v1084
      %1164 = vst.msk [vmem:[%s186 + $0x160] sm:$0xff] %vm1119, %v1089
      %1165 = vst.msk [vmem:[%s186 + $0x168] sm:$0xff] %vm1119, %v1092
      %1166 = vst.msk [vmem:[%s186 + $0x170] sm:$0xff] %vm1119, %v1097
      %1167 = vst.msk [vmem:[%s186 + $0x178] sm:$0xff] %vm1119, %v1100
      %1168 = vst.msk [vmem:[%s186 + $0x180] sm:$0xff] %vm1119, %v1105
      %1169 = vst.msk [vmem:[%s186 + $0x188] sm:$0xff] %vm1119, %v1108
      %1170 = vst.msk [vmem:[%s186 + $0x190] sm:$0xff] %vm1119, %v1113
      %1171 = vst.msk [vmem:[%s186 + $0x198] sm:$0xff] %vm1119, %v1116
      %s1172 = smul.u32 52, %s20
      %p1173 = scmp.lt.s32.totalorder %s19, 1
      %s1174 = scalar_select %p1173, %s19, 1
      %p1175 = scmp.lt.s32.totalorder %s1172, 51
      %s1176 = scalar_select %p1175, %s1172, 51
      %s1177 = smul.addr %s1174, 52
      %s1178 = sadd.s32 %s1176, %s1177
      %s1179 = smul.addr %s1178, 8
      %s1180 = scalar_lea.vmem %s3, %s1179
      // Predicated region
      $region29: #{tpu_custom_call.1} parent=27 // pred_check
        %p1181 = pneg %p99
      $region30: #{tpu_custom_call.1} parent=27 // pred_check_branch
        %1183 = sbr.rel (%p1181) target = $region32
      $region31: #{tpu_custom_call.1} parent=27 // pred_region
        %s1184 = smul.u32 52, %s20
      $region32: #{tpu_custom_call.1} parent=27 // pred_fallthru
        _
    $region28: #{tpu_custom_call.1} parent=5 // pred_fallthru
      _
    %p1185 = scmp.le.s32.totalorder 2, %s10
    // Predicated region
    $region33: #{tpu_custom_call.1} parent=5 // pred_check
      %p1186 = pneg %p1185
    $region34: #{tpu_custom_call.1} parent=5 // pred_check_branch
      %1188 = sbr.rel (%p1186) target = $region36
    $region35: #{tpu_custom_call.1} parent=5 // pred_region
      %s1189 = ssub.s32 %s10, 2
      // Predicated region
      $region37: #{tpu_custom_call.1} parent=35 // pred_check
        %p1190 = pneg %p105
      $region38: #{tpu_custom_call.1} parent=35 // pred_check_branch
        %1192 = sbr.rel (%p1190) target = $region40
      $region39: #{tpu_custom_call.1} parent=35 // pred_region
        %s1193 = smul.u32 52, %s22
        %p1194 = scmp.lt.s32.totalorder %s21, 1
        %s1195 = scalar_select %p1194, %s21, 1
        %p1196 = scmp.lt.s32.totalorder %s1193, 51
        %s1197 = scalar_select %p1196, %s1193, 51
        %s1198 = smul.addr %s1195, 52
        %s1199 = sadd.s32 %s1197, %s1198
        %s1200 = smul.addr %s1199, 8
        %s1201 = scalar_lea.vmem %s3, %s1200
      $region40: #{tpu_custom_call.1} parent=35 // pred_fallthru
        _
    $region36: #{tpu_custom_call.1} parent=5 // pred_fallthru
      _
  $region6: #{tpu_custom_call.1} parent=0 // loop_footer
    %s14 = sadd.s32 1, %s10
  $region7: #{tpu_custom_call.1} parent=0 // loop_footer_branch
    %9 = sbr.rel target = $region3
  $region8: #{tpu_custom_call.1} parent=0 // loop_exit
    _

</llo_original>
